<compile_context>
chip_gen: v7x
topology: tpu7x:2x2x1
jax: 0.10.0
libtpu: 0.0.40
codegen_flags: <defaults>
</compile_context>

<pallas_src>
import numpy as np

import jax
import jax.numpy as jnp
from jax.experimental import pallas as pl
from jax.experimental.pallas import tpu as pltpu

LOG_EPS = 1e-10
LANE = 128


# ---------------------------------------------------------------------------
# Host-side setup (mirrors the PyTorch buffer construction)
# ---------------------------------------------------------------------------
def create_hierarchy_matrix(lower_level, higher_level, levels_dict):
    lower = levels_dict[f"level_{lower_level}"]
    higher = levels_dict[f"level_{higher_level}"]
    mat = np.zeros((len(lower), len(higher)), dtype=np.float32)
    for hi, hl in higher.items():
        prefix = hl.split("-")[0]
        for li, ll in lower.items():
            if ll.startswith(prefix):
                mat[li, hi] = 1.0
    return jnp.asarray(mat)


def build_levels_dict(branching=(4, 2, 2, 2)):
    """Deterministic EC-style label hierarchy: 4 -> 8 -> 16 -> 32 classes."""
    level_1 = {i: f"{i + 1}" for i in range(branching[0])}
    levels = {"level_1": level_1}
    prev = level_1
    for lvl in (2, 3, 4):
        cur, idx = {}, 0
        for _, parent in sorted(prev.items()):
            for c in range(branching[lvl - 1]):
                cur[idx] = f"{parent}.{c + 1}"
                idx += 1
        levels[f"level_{lvl}"] = cur
        prev = cur
    return levels


def build_composite_weight(m43, m32, m21):
    """W = [M43@M32@M21 | M43@M32 | M43 | I], zero-padded to 128 lanes.

    exp(x) @ W produces [l1 | l2 | l3 | l4] in one MXU pass.  All entries are
    exact small integers / 0-1 values in f32.
    """
    n4, n3 = m43.shape
    n2, n1 = m32.shape[1], m21.shape[1]
    c3 = m43.astype(jnp.float32)          # l4 -> l3
    c2 = c3 @ m32.astype(jnp.float32)     # l4 -> l2
    c1 = c2 @ m21.astype(jnp.float32)     # l4 -> l1
    eye = jnp.eye(n4, dtype=jnp.float32)  # l4 -> l4 (identity)
    w = jnp.concatenate([c1, c2, c3, eye], axis=1)   # (n4, n1+n2+n3+n4)
    total = n1 + n2 + n3 + n4
    n_pad = ((total + LANE - 1) // LANE) * LANE
    w_pad = jnp.pad(w, ((0, 0), (0, n_pad - total)))  # lane-dense output slab
    return w_pad, (n1, n2, n3, n4)


# ---------------------------------------------------------------------------
# Pallas kernel: exp -> one matmul -> one log, one lane-dense output slab
# ---------------------------------------------------------------------------
def _ec_aggregate_kernel(x_ref, w_ref, o_ref):
    # x_ref: (TB, n4); w_ref: (n4, n_pad); o_ref: (TB, n_pad)
    l4 = jnp.exp(x_ref[...])                                             # EUP
    slab = jnp.dot(l4, w_ref[...], preferred_element_type=jnp.float32)   # MXU
    o_ref[...] = jnp.log(slab + LOG_EPS)                                 # EUP + unmasked vst


def _default_block_b(B):
    # Mem-bound kernel: biggest tiles possible.  For large B keep >= 2 grid
    # steps so the "parallel" axis can shard across v7x's two TensorCores.
    if B <= 1024:
        return B
    return min(8192, ((pl.cdiv(B, 2) + 7) // 8) * 8)


def ec_aggregate_forward(x, w_pad, sizes, *, block_b=None):
    """x: (B, n4) float32 log-scores. Returns [log l1, log l2, log l3, log l4]."""
    B, n4 = x.shape
    n_pad = w_pad.shape[1]
    if block_b is None:
        block_b = _default_block_b(B)
    grid = (pl.cdiv(B, block_b),)

    slab = pl.pallas_call(
        _ec_aggregate_kernel,
        out_shape=jax.ShapeDtypeStruct((B, n_pad), jnp.float32),
        grid=grid,
        in_specs=[
            pl.BlockSpec((block_b, n4), lambda i: (i, 0)),      # x batch tile
            pl.BlockSpec((n4, n_pad), lambda i: (0, 0)),        # constant W (VMEM resident)
        ],
        out_specs=pl.BlockSpec((block_b, n_pad), lambda i: (i, 0)),
        compiler_params=pltpu.CompilerParams(
            dimension_semantics=("parallel",)),
    )(x, w_pad)

    n1, n2, n3, n4_ = sizes
    o1 = slab[:, :n1]
    o2 = slab[:, n1:n1 + n2]
    o3 = slab[:, n1 + n2:n1 + n2 + n3]
    o4 = slab[:, n1 + n2 + n3:n1 + n2 + n3 + n4_]
    return [o1, o2, o3, o4]


# ---------------------------------------------------------------------------
# Pure-JAX reference (same math as the PyTorch forward)
# ---------------------------------------------------------------------------
def reference_forward(x, m43, m32, m21):
    l4 = jnp.exp(x)
    l3 = l4 @ m43
    l2 = l3 @ m32
    l1 = l2 @ m21
    return [jnp.log(l1 + LOG_EPS), jnp.log(l2 + LOG_EPS),
            jnp.log(l3 + LOG_EPS), jnp.log(l4 + LOG_EPS)]


if __name__ == "__main__":
    levels_dict = build_levels_dict()                 # 4 / 8 / 16 / 32 classes
    m43 = create_hierarchy_matrix(4, 3, levels_dict)  # (32, 16)
    m32 = create_hierarchy_matrix(3, 2, levels_dict)  # (16, 8)
    m21 = create_hierarchy_matrix(2, 1, levels_dict)  # (8, 4)

    # One-time setup: composite padded weight (the "module buffer").
    w_pad, sizes = build_composite_weight(m43, m32, m21)
    n1, n2, n3, n4 = sizes

    key = jax.random.PRNGKey(0)

    # --- primary small-shape check: B = 8 -------------------------------
    B = 8
    x = jax.nn.log_softmax(
        jax.random.normal(key, (B, n4), dtype=jnp.float32), axis=-1)

    outs = ec_aggregate_forward(x, w_pad, sizes)
    outs = [jax.block_until_ready(o) for o in outs]
    refs = reference_forward(x, m43, m32, m21)
    for o, r, n in zip(outs, refs, (n1, n2, n3, n4)):
        assert o.shape == (B, n) and o.dtype == jnp.float32
        assert bool(jnp.allclose(o, r, atol=1e-5, rtol=1e-5)), \
            float(jnp.max(jnp.abs(o - r)))

    # --- secondary check: multi-tile grid + partial last tile ------------
    B2 = 300
    x2 = jax.nn.log_softmax(
        jax.random.normal(jax.random.PRNGKey(1), (B2, n4), dtype=jnp.float32),
        axis=-1)
    outs2 = ec_aggregate_forward(x2, w_pad, sizes, block_b=128)
    outs2 = [jax.block_until_ready(o) for o in outs2]
    refs2 = reference_forward(x2, m43, m32, m21)
    for o, r in zip(outs2, refs2):
        assert bool(jnp.allclose(o, r, atol=1e-5, rtol=1e-5)), \
            float(jnp.max(jnp.abs(o - r)))

    print("KERNEL_OK")
</pallas_src>

<mosaic_0001>
module attributes {stable_mosaic.version = 11 : i64} {
  func.func @_ec_aggregate_kernel(%arg0: i32, %arg1: memref<8x32xf32, #tpu.memory_space<vmem>>, %arg2: memref<32x128xf32, #tpu.memory_space<vmem>>, %arg3: memref<8x128xf32, #tpu.memory_space<vmem>>) attributes {dimension_semantics = [#tpu.dimension_semantics<parallel>], iteration_bounds = array<i64: 1>, scalar_prefetch = 0 : i64, scratch_operands = 0 : i64, tpu.core_type = #tpu.core_type<tc>, window_params = [{transform_indices = @transform_0, window_bounds = array<i64: 8, 32>}, {pipeline_mode = #tpu.pipeline_mode<synchronous>, transform_indices = @transform_1, window_bounds = array<i64: 32, 128>}, {transform_indices = @transform_2, window_bounds = array<i64: 8, 128>}]} {
    %c0 = arith.constant 0 : index
    %c0_0 = arith.constant 0 : index
    %0 = vector.load %arg1[%c0, %c0_0] : memref<8x32xf32, #tpu.memory_space<vmem>>, vector<8x32xf32>
    %1 = math.exp %0 : vector<8x32xf32>
    %c0_1 = arith.constant 0 : index
    %c0_2 = arith.constant 0 : index
    %2 = vector.load %arg2[%c0_1, %c0_2] : memref<32x128xf32, #tpu.memory_space<vmem>>, vector<32x128xf32>
    %cst = arith.constant dense<0.000000e+00> : vector<8x128xf32>
    %3 = tpu.matmul %1, %2, %cst {dimension_numbers = #tpu.dot_dimension_numbers<[1], [0], [0], [1], [0, 0, 1, 1], [], []>} : vector<8x32xf32>, vector<32x128xf32>, vector<8x128xf32> -> vector<8x128xf32>
    %cst_3 = arith.constant 1.000000e-10 : f32
    %4 = vector.broadcast %cst_3 : f32 to vector<8x128xf32>
    %5 = arith.addf %3, %4 : vector<8x128xf32>
    %6 = math.log %5 : vector<8x128xf32>
    %c0_4 = arith.constant 0 : index
    %c0_5 = arith.constant 0 : index
    %7 = vector.load %arg3[%c0_4, %c0_5] : memref<8x128xf32, #tpu.memory_space<vmem>>, vector<8x128xf32>
    tpu.vector_store %arg3[%c0_4, %c0_5], %6 {strides = array<i32>} : memref<8x128xf32, #tpu.memory_space<vmem>>, vector<8x128xf32>,
    return
  }
  func.func @transform_0(%arg0: i32) -> (i32, i32) {
    %c0_i32 = arith.constant 0 : i32
    %c0_i32_0 = arith.constant 0 : i32
    return %arg0, %c0_i32 : i32, i32
  }
  func.func @transform_1(%arg0: i32) -> (i32, i32) {
    %c0_i32 = arith.constant 0 : i32
    %c0_i32_0 = arith.constant 0 : i32
    %c0_i32_1 = arith.constant 0 : i32
    return %c0_i32, %c0_i32_0 : i32, i32
  }
  func.func @transform_2(%arg0: i32) -> (i32, i32) {
    %c0_i32 = arith.constant 0 : i32
    %c0_i32_0 = arith.constant 0 : i32
    return %arg0, %c0_i32 : i32, i32
  }
}

</mosaic_0001>

<llo_original>
// kernel: tpu_custom_call.1
$region0: #{tpu_custom_call.1}
  #allocation0 [shape = 'u32[]', space=smem, size = 0x4, offset = 0x4, fixed_abs, tag = 'smem constant byte address 0x4 - core index']
  #allocation1 [shape = 'u32[144,128]{1,0:T(1,128)}', space=vmem, size = 0x12000, scoped, tag = 'internal scratch']
  %s0 = inlined_call_operand.hbm [shape: f32[8,32], index: 0, kind: input, shape index: {}]
  %s1 = inlined_call_operand.hbm [shape: f32[32,128], index: 1, kind: input, shape index: {}]
  %s2 = inlined_call_operand.hbm [shape: f32[8,128], index: 2, kind: output, shape index: {}]
  %s3 = sld [smem:[#allocation0]]
  $region26: #{tpu_custom_call.1} parent=0
    _
  %s5 = ssub.s32 1, %s3
  %s6 = scalar_select 0, %s5, %s3
  $region1: #{tpu_custom_call.1} parent=0
    #allocation2 [shape = 'u8[4096]{0}', space=vmem, size = 0x1000, scoped, tag = 'input window, operand 0, single buffered']
    #allocation3 [shape = 's32[1]{0}', space=sflag, size = 0x4, scoped, tag = 'scoped memory for tpu_custom_call.1']
    #allocation4 [shape = 's32[1]{0}', space=sflag, size = 0x4, scoped, tag = 'scoped memory for tpu_custom_call.1']
    #allocation5 [shape = 'u8[16384]{0}', space=vmem, size = 0x4000, scoped, tag = 'input window, operand 1, single buffered']
    #allocation6 [shape = 's32[1]{0}', space=sflag, size = 0x4, scoped, tag = 'scoped memory for tpu_custom_call.1']
    #allocation7 [shape = 'u8[4096]{0}', space=vmem, size = 0x1000, scoped, tag = 'output window, operand 0, single buffered']
    %7 = vsyncpa [#allocation3], 0
    %8 = vsyncpa [#allocation6], 0
    %9 = vsyncpa [#allocation4], 0
    // Predicated region
    $region2: #{tpu_custom_call.1} parent=1 // pred_check
      _
    $region3: #{tpu_custom_call.1} parent=1 // pred_check_branch
      %11 = sbr.rel (0) target = $region5
    $region4: #{tpu_custom_call.1} parent=1 // pred_region
      %s13 = ssub.s32 128, 128
      %14 = vsyncadd [#allocation3], %s13
      %s16 = sshll.u32 [#allocation2], 4
      %s17 = int_to_ptr.vmem [resolvable:$true] %s16
      %19 = dma.hbm_to_vmem [thread:$0]  %s0, 128, %s17, [#allocation3]
    $region5: #{tpu_custom_call.1} parent=1 // pred_fallthru
      _
    // Predicated region
    $region6: #{tpu_custom_call.1} parent=1 // pred_check
      _
    $region7: #{tpu_custom_call.1} parent=1 // pred_check_branch
      %21 = sbr.rel (0) target = $region9
    $region8: #{tpu_custom_call.1} parent=1 // pred_region
      %s23 = ssub.s32 512, 512
      %24 = vsyncadd [#allocation6], %s23
      %s25 = sshll.u32 [#allocation5], 4
      %s26 = int_to_ptr.vmem [resolvable:$true] %s25
      %31 = dma.hbm_to_vmem [thread:$0]  %s1, 512, %s26, [#allocation6], 128, 128, 8
    $region9: #{tpu_custom_call.1} parent=1 // pred_fallthru
      _
    // Predicated region
    $region10: #{tpu_custom_call.1} parent=1 // pred_check
      _
    $region11: #{tpu_custom_call.1} parent=1 // pred_check_branch
      %33 = sbr.rel (0) target = $region13
    $region12: #{tpu_custom_call.1} parent=1 // pred_region
      %34 = dma.done [#allocation3], 128
    $region13: #{tpu_custom_call.1} parent=1 // pred_fallthru
      _
    // Predicated region
    $region14: #{tpu_custom_call.1} parent=1 // pred_check
      _
    $region15: #{tpu_custom_call.1} parent=1 // pred_check_branch
      %36 = sbr.rel (0) target = $region17
    $region16: #{tpu_custom_call.1} parent=1 // pred_region
      %37 = dma.done [#allocation6], 512
    $region17: #{tpu_custom_call.1} parent=1 // pred_fallthru
      _
    %v38 = vld [vmem:[#allocation2] sm:$0xff]
    %v39 = vmul.f32 %v38, 1.442695
    %v40 = vpow.pop %v39
    %v41 = vld [vmem:[#allocation5] sm:$0xff]
    %v42 = vld [vmem:[#allocation5 + $0x8] sm:$0xff]
    %v43 = vld [vmem:[#allocation5 + $0x10] sm:$0xff]
    %v44 = vld [vmem:[#allocation5 + $0x18] sm:$0xff]
    %vm45 = vcmask 261120
    %v47 = vsel %vm45, %v40, 0
    %49 = vmatprep.subr.mxu0 0.0
    %50 = vmatpush1.msra.mxu0 %v41
    %51 = vmatprep.subr.mxu0 0.0
    %52 = vmatpush1.msra.mxu0 %v42
    %53 = vmatprep.subr.mxu0 0.0
    %54 = vmatpush1.msra.mxu0 %v43
    %55 = vmatprep.subr.mxu0 0.0
    %56 = vmatpush1.msra.mxu0 %v44
    %57 = vmatprep.subr.mxu0 0.0
    %58 = vmatpush1.msra.mxu0 0.0
    %59 = vmatprep.subr.mxu0 0.0
    %60 = vmatpush1.msra.mxu0 0.0
    %61 = vmatprep.subr.mxu0 0.0
    %62 = vmatpush1.msra.mxu0 0.0
    %63 = vmatprep.subr.mxu0 0.0
    %64 = vmatpush1.msra.mxu0 0.0
    %65 = vmatprep.subr.mxu0 0.0
    %66 = vmatpush1.msra.mxu0 0.0
    %67 = vmatprep.subr.mxu0 0.0
    %68 = vmatpush1.msra.mxu0 0.0
    %69 = vmatprep.subr.mxu0 0.0
    %70 = vmatpush1.msra.mxu0 0.0
    %71 = vmatprep.subr.mxu0 0.0
    %72 = vmatpush1.msra.mxu0 0.0
    %73 = vmatprep.subr.mxu0 0.0
    %74 = vmatpush1.msra.mxu0 0.0
    %75 = vmatprep.subr.mxu0 0.0
    %76 = vmatpush1.msra.mxu0 0.0
    %77 = vmatprep.subr.mxu0 0.0
    %78 = vmatpush1.msra.mxu0 0.0
    %79 = vmatprep.subr.mxu0 0.0
    %80 = vmatpush1.msra.mxu0 0.0
    %81 = vmatprep.subr.mxu0 0.0
    %82 = vmatpush1.msra.mxu0 0.0
    %83 = vmatprep.subr.mxu0 0.0
    %84 = vmatpush1.msra.mxu0 0.0
    %85 = vmatprep.subr.mxu0 0.0
    %86 = vmatpush1.msra.mxu0 0.0
    %87 = vmatprep.subr.mxu0 0.0
    %88 = vmatpush1.msra.mxu0 0.0
    %89 = vmatprep.subr.mxu0 0.0
    %90 = vmatpush1.msra.mxu0 0.0
    %91 = vmatprep.subr.mxu0 0.0
    %92 = vmatpush1.msra.mxu0 0.0
    %93 = vmatprep.subr.mxu0 0.0
    %94 = vmatpush1.msra.mxu0 0.0
    %95 = vmatprep.subr.mxu0 0.0
    %96 = vmatpush1.msra.mxu0 0.0
    %97 = vmatprep.subr.mxu0 0.0
    %98 = vmatpush1.msra.mxu0 0.0
    %99 = vmatprep.subr.mxu0 0.0
    %100 = vmatpush1.msra.mxu0 0.0
    %101 = vmatprep.subr.mxu0 0.0
    %102 = vmatpush1.msra.mxu0 0.0
    %103 = vmatprep.subr.mxu0 0.0
    %104 = vmatpush1.msra.mxu0 0.0
    %105 = vmatprep.subr.mxu0 0.0
    %106 = vmatpush1.msra.mxu0 0.0
    %107 = vmatprep.subr.mxu0 0.0
    %108 = vmatpush1.msra.mxu0 0.0
    %109 = vmatprep.subr.mxu0 0.0
    %110 = vmatpush1.msra.mxu0 0.0
    %111 = vmatprep.subr.mxu0 0.0
    %112 = vmatpush1.msra.mxu0 0.0
    %113 = vmatprep.mubr.f32.mxu0 0.0
    %114 = vmatmul.mubr.f32.gmra.mrb[0].mxu0 %v47
    %v115 = vpop.f32.mrb[0].mxu0
    %v116 = vadd.f32 1e-10, %v115
    %v117 = vpop.f32.mrb[0].mxu0
    %118 = vdwg.mxu0
    %v119 = vlog2.pop %v116
    %v120 = vmul.f32 %v119, 0.6931472
    %121 = vst [vmem:[#allocation7] sm:$0xff] %v120
    // Predicated region
    $region18: #{tpu_custom_call.1} parent=1 // pred_check
      _
    $region19: #{tpu_custom_call.1} parent=1 // pred_check_branch
      %123 = sbr.rel (0) target = $region21
    $region20: #{tpu_custom_call.1} parent=1 // pred_region
      %s125 = ssub.s32 128, 128
      %126 = vsyncadd [#allocation4], %s125
      %s128 = sshll.u32 [#allocation7], 4
      %s129 = int_to_ptr.vmem [resolvable:$true] %s128
      %131 = dma.vmem_to_hbm [thread:$0]  %s129, 128, %s2, [#allocation4]
    $region21: #{tpu_custom_call.1} parent=1 // pred_fallthru
      _
    // Predicated region
    $region22: #{tpu_custom_call.1} parent=1 // pred_check
      _
    $region23: #{tpu_custom_call.1} parent=1 // pred_check_branch
      %133 = sbr.rel (0) target = $region25
    $region24: #{tpu_custom_call.1} parent=1 // pred_region
      %134 = dma.done [#allocation4], 128
    $region25: #{tpu_custom_call.1} parent=1 // pred_fallthru
      _
    %135 = vsyncpa [#allocation3], 1
    %136 = vsyncpa [#allocation6], 1
    %137 = vsyncpa [#allocation4], 1

</llo_original>
